<compile_context>
chip_gen: v5e
topology: v5e:2x2
jax: 0.10.0
libtpu: 0.0.40
codegen_flags: <defaults>
</compile_context>

<pallas_src>
import math
import functools

import jax
import jax.numpy as jnp
from jax.experimental import pallas as pl
from jax.experimental.pallas import tpu as pltpu


def build_pe_table(d_model: int, max_len: int = 5000) -> jnp.ndarray:
    """Deterministic sinusoidal positional-encoding table, shape (max_len, d_model)."""
    position = jnp.arange(0, max_len, dtype=jnp.float32)[:, None]            # (L, 1)
    div_term = jnp.exp(jnp.arange(0, d_model, 2, dtype=jnp.float32)
                       * (-(math.log(10000.0) / d_model)))                   # (d_model/2,)
    ang = position * div_term                                                # (L, d_model/2)
    pe = jnp.zeros((max_len, d_model), dtype=jnp.float32)
    pe = pe.at[:, 0::2].set(jnp.sin(ang))
    pe = pe.at[:, 1::2].set(jnp.cos(ang))
    return pe


# ----------------------------- kernels --------------------------------------

def _pe_add_kernel(x_ref, pe_ref, o_ref):
    # x_ref: (TR, TC), pe_ref: (1, TC) -- broadcast over rows.
    o_ref[...] = x_ref[...] + pe_ref[...]


def _pe_add_dropout_kernel(x_ref, pe_ref, bits_ref, o_ref, *, p: float):
    # Inverted dropout (torch.nn.Dropout training semantics): keep with prob
    # 1-p, scale kept values by 1/(1-p).
    y = x_ref[...] + pe_ref[...]
    threshold = jnp.uint32(min(int(p * 4294967296.0), 4294967295))
    keep = bits_ref[...] >= threshold
    o_ref[...] = jnp.where(keep, y * (1.0 / (1.0 - p)), jnp.zeros_like(y))


# ----------------------------- tiling helpers --------------------------------

def _choose_row_tile(rows: int, max_rows: int = 512) -> int:
    """Row (batch) tile: full rows if small/irregular, else a multiple of 8 dividing rows."""
    if rows <= max_rows or rows % 8 != 0:
        return rows
    tr = max_rows - (max_rows % 8)
    while tr >= 8:
        if rows % tr == 0:
            return tr
        tr -= 8
    return rows


def _choose_col_tile(cols: int, row_tile: int, itemsize: int,
                     target_bytes: int = 4 * 1024 * 1024) -> int:
    """Largest lane-dense (multiple-of-128) tile dividing cols with tile <= target_bytes."""
    if cols % 128 != 0:
        return cols                      # full last dim -> still a legal block
    units = cols // 128
    best = 128
    for k in range(1, units + 1):
        if units % k == 0 and row_tile * k * 128 * itemsize <= target_bytes:
            best = k * 128
    return best


# ----------------------------- wrapper ---------------------------------------

def positional_encoding(x: jnp.ndarray,
                        pe_table: jnp.ndarray,
                        *,
                        p: float = 0.1,
                        train: bool = False,
                        rng_key=None) -> jnp.ndarray:
    """x: (B, S, D).  Returns dropout(x + pe[:S]) with PyTorch semantics."""
    B, S, D = x.shape
    C = S * D

    # Glue: slice + cast pe once (halves pe DMA bytes if x is bf16), flatten
    # everything to a lane-dense 2-D view.
    pe_flat = pe_table[:S, :].astype(x.dtype).reshape(1, C)
    x2 = x.reshape(B, C)

    TR = _choose_row_tile(B)
    TC = _choose_col_tile(C, TR, jnp.dtype(x.dtype).itemsize)
    grid = (B // TR, C // TC)

    x_spec = pl.BlockSpec((TR, TC), lambda r, c: (r, c))
    pe_spec = pl.BlockSpec((1, TC), lambda r, c: (0, c))
    bits_spec = pl.BlockSpec((TR, TC), lambda r, c: (r, c))
    out_spec = pl.BlockSpec((TR, TC), lambda r, c: (r, c))

    cparams = pltpu.CompilerParams(
        dimension_semantics=("parallel", "parallel"),
        vmem_limit_bytes=48 * 1024 * 1024,
    )

    if train and p > 0.0:
        if p >= 1.0:
            raise ValueError("dropout p must be < 1 in train mode")
        if rng_key is None:
            rng_key = jax.random.PRNGKey(0)
        bits = jax.random.bits(rng_key, (B, C), dtype=jnp.uint32)
        kernel = functools.partial(_pe_add_dropout_kernel, p=p)
        out2 = pl.pallas_call(
            kernel,
            out_shape=jax.ShapeDtypeStruct((B, C), x.dtype),
            grid=grid,
            in_specs=[x_spec, pe_spec, bits_spec],
            out_specs=out_spec,
            compiler_params=cparams,
        )(x2, pe_flat, bits)
    else:
        out2 = pl.pallas_call(
            _pe_add_kernel,
            out_shape=jax.ShapeDtypeStruct((B, C), x.dtype),
            grid=grid,
            in_specs=[x_spec, pe_spec],
            out_specs=out_spec,
            compiler_params=cparams,
        )(x2, pe_flat)

    return out2.reshape(B, S, D)


# ----------------------------- demo / check ----------------------------------

if __name__ == "__main__":
    key = jax.random.PRNGKey(0)
    kx, kdrop = jax.random.split(key)

    B, S, D = 2, 8, 32               # batch, seq, d_model
    x = jax.random.normal(kx, (B, S, D), dtype=jnp.float32)
    pe_table = build_pe_table(d_model=D, max_len=5000)

    # --- eval mode (dropout is identity): exact check against reference ---
    out_eval = positional_encoding(x, pe_table, p=0.1, train=False)
    out_eval = jax.block_until_ready(out_eval)
    ref = x + pe_table[None, :S, :]
    assert out_eval.shape == (B, S, D)
    assert jnp.allclose(out_eval, ref, atol=1e-6), "eval-mode mismatch"

    # --- train mode: inverted dropout ---
    out_train = positional_encoding(x, pe_table, p=0.1, train=True, rng_key=kdrop)
    out_train = jax.block_until_ready(out_train)
    assert out_train.shape == (B, S, D)
    # every surviving element equals ref / (1-p); dropped ones are exactly 0
    scaled = ref / (1.0 - 0.1)
    ok = jnp.logical_or(jnp.isclose(out_train, scaled, atol=1e-5, rtol=1e-5),
                        out_train == 0.0)
    assert bool(jnp.all(ok)), "train-mode dropout mismatch"

    print("KERNEL_OK")
</pallas_src>

<mosaic_0001>
module attributes {stable_mosaic.version = 11 : i64} {
  func.func @_pe_add_kernel(%arg0: i32, %arg1: i32, %arg2: memref<2x256xf32, #tpu.memory_space<vmem>>, %arg3: memref<1x256xf32, #tpu.memory_space<vmem>>, %arg4: memref<2x256xf32, #tpu.memory_space<vmem>>) attributes {dimension_semantics = [#tpu.dimension_semantics<parallel>, #tpu.dimension_semantics<parallel>], iteration_bounds = array<i64: 1, 1>, scalar_prefetch = 0 : i64, scratch_operands = 0 : i64, tpu.core_type = #tpu.core_type<tc>, window_params = [{transform_indices = @transform_0, window_bounds = array<i64: 2, 256>}, {transform_indices = @transform_1, window_bounds = array<i64: 1, 256>}, {transform_indices = @transform_2, window_bounds = array<i64: 2, 256>}]} {
    %c0 = arith.constant 0 : index
    %c0_0 = arith.constant 0 : index
    %0 = vector.load %arg2[%c0, %c0_0] : memref<2x256xf32, #tpu.memory_space<vmem>>, vector<2x256xf32>
    %c0_1 = arith.constant 0 : index
    %c0_2 = arith.constant 0 : index
    %1 = vector.load %arg3[%c0_1, %c0_2] : memref<1x256xf32, #tpu.memory_space<vmem>>, vector<1x256xf32>
    %2 = vector.broadcast %1 : vector<1x256xf32> to vector<2x256xf32>
    %3 = arith.addf %0, %2 : vector<2x256xf32>
    %c0_3 = arith.constant 0 : index
    %c0_4 = arith.constant 0 : index
    %4 = vector.load %arg4[%c0_3, %c0_4] : memref<2x256xf32, #tpu.memory_space<vmem>>, vector<2x256xf32>
    tpu.vector_store %arg4[%c0_3, %c0_4], %3 {strides = array<i32>} : memref<2x256xf32, #tpu.memory_space<vmem>>, vector<2x256xf32>,
    return
  }
  func.func @transform_0(%arg0: i32, %arg1: i32) -> (i32, i32) {
    %c0_i32 = arith.constant 0 : i32
    return %arg0, %arg1 : i32, i32
  }
  func.func @transform_1(%arg0: i32, %arg1: i32) -> (i32, i32) {
    %c0_i32 = arith.constant 0 : i32
    %c0_i32_0 = arith.constant 0 : i32
    return %c0_i32, %arg1 : i32, i32
  }
  func.func @transform_2(%arg0: i32, %arg1: i32) -> (i32, i32) {
    %c0_i32 = arith.constant 0 : i32
    return %arg0, %arg1 : i32, i32
  }
}

</mosaic_0001>

<llo_original>
// kernel: tpu_custom_call.1
$region0: #{tpu_custom_call.1}
  #allocation0 [shape = 'u32[]', space=smem, size = 0x4, offset = 0x4, fixed_abs, tag = 'smem constant byte address 0x4 - core index']
  #allocation1 [shape = 'u32[72,128]{1,0:T(1,128)}', space=vmem, size = 0x9000, scoped, tag = 'internal scratch']
  %s0 = inlined_call_operand.hbm [shape: f32[2,256], index: 0, kind: input, shape index: {}]
  %s1 = inlined_call_operand.hbm [shape: f32[1,256], index: 1, kind: input, shape index: {}]
  %s2 = inlined_call_operand.hbm [shape: f32[2,256], index: 2, kind: output, shape index: {}]
  %s3 = sld [smem:[#allocation0]]
  $region26: #{tpu_custom_call.1} parent=0
    _
  %s5 = ssub.s32 1, %s3
  %s6 = scalar_select 0, %s5, %s3
  $region1: #{tpu_custom_call.1} parent=0
    #allocation2 [shape = 'u8[2048]{0}', space=vmem, size = 0x800, scoped, tag = 'input window, operand 0, single buffered']
    #allocation3 [shape = 's32[1]{0}', space=sflag, size = 0x4, scoped, tag = 'scoped memory for tpu_custom_call.1']
    #allocation4 [shape = 's32[1]{0}', space=sflag, size = 0x4, scoped, tag = 'scoped memory for tpu_custom_call.1']
    #allocation5 [shape = 'u8[1024]{0}', space=vmem, size = 0x400, scoped, tag = 'input window, operand 1, single buffered']
    #allocation6 [shape = 's32[1]{0}', space=sflag, size = 0x4, scoped, tag = 'scoped memory for tpu_custom_call.1']
    #allocation7 [shape = 'u8[2048]{0}', space=vmem, size = 0x800, scoped, tag = 'output window, operand 0, single buffered']
    %7 = vsyncpa [#allocation3], 0
    %8 = vsyncpa [#allocation6], 0
    %9 = vsyncpa [#allocation4], 0
    // Predicated region
    $region2: #{tpu_custom_call.1} parent=1 // pred_check
      _
    $region3: #{tpu_custom_call.1} parent=1 // pred_check_branch
      %11 = sbr.rel (0) target = $region5
    $region4: #{tpu_custom_call.1} parent=1 // pred_region
      %13 = vsyncadd [#allocation3], 0
      %s15 = sshll.u32 %s0, 4
      %s16 = int_to_ptr.hbm [resolvable:$true] %s15
      %s17 = sshll.u32 [#allocation2], 4
      %s18 = int_to_ptr.vmem [resolvable:$true] %s17
      %20 = dma.hbm_to_vmem [thread:$0]  %s16, 64, %s18, [#allocation3]
    $region5: #{tpu_custom_call.1} parent=1 // pred_fallthru
      _
    // Predicated region
    $region6: #{tpu_custom_call.1} parent=1 // pred_check
      _
    $region7: #{tpu_custom_call.1} parent=1 // pred_check_branch
      %22 = sbr.rel (0) target = $region9
    $region8: #{tpu_custom_call.1} parent=1 // pred_region
      %24 = vsyncadd [#allocation6], 0
      %s26 = sshll.u32 %s1, 4
      %s27 = int_to_ptr.hbm [resolvable:$true] %s26
      %s28 = sshll.u32 [#allocation5], 4
      %s29 = int_to_ptr.vmem [resolvable:$true] %s28
      %31 = dma.hbm_to_vmem [thread:$0]  %s27, 32, %s29, [#allocation6]
    $region9: #{tpu_custom_call.1} parent=1 // pred_fallthru
      _
    // Predicated region
    $region10: #{tpu_custom_call.1} parent=1 // pred_check
      _
    $region11: #{tpu_custom_call.1} parent=1 // pred_check_branch
      %33 = sbr.rel (0) target = $region13
    $region12: #{tpu_custom_call.1} parent=1 // pred_region
      %35 = dma.done [#allocation3], 64
    $region13: #{tpu_custom_call.1} parent=1 // pred_fallthru
      _
    // Predicated region
    $region14: #{tpu_custom_call.1} parent=1 // pred_check
      _
    $region15: #{tpu_custom_call.1} parent=1 // pred_check_branch
      %37 = sbr.rel (0) target = $region17
    $region16: #{tpu_custom_call.1} parent=1 // pred_region
      %39 = dma.done [#allocation6], 32
    $region17: #{tpu_custom_call.1} parent=1 // pred_fallthru
      _
    %v40 = vld [vmem:[#allocation2] sm:$0xf]
    %v41 = vld [vmem:[#allocation5] sm:$0x3]
    %v43 = vperm.slane %v41, 0
    %v44 = vperm.slane %v41, 1
    %v45 = vrot.slane %v44, 6
    %vm46 = vcmask 1041408
    %v47 = vsel %vm46, %v43, %v45
    %v49 = vadd.f32 %v40, %v47
    %50 = vst [vmem:[#allocation7] sm:$0xf] %v49
    // Predicated region
    $region18: #{tpu_custom_call.1} parent=1 // pred_check
      _
    $region19: #{tpu_custom_call.1} parent=1 // pred_check_branch
      %52 = sbr.rel (0) target = $region21
    $region20: #{tpu_custom_call.1} parent=1 // pred_region
      %54 = vsyncadd [#allocation4], 0
      %s56 = sshll.u32 [#allocation7], 4
      %s57 = int_to_ptr.vmem [resolvable:$true] %s56
      %s58 = sshll.u32 %s2, 4
      %s59 = int_to_ptr.hbm [resolvable:$true] %s58
      %61 = dma.vmem_to_hbm [thread:$0]  %s57, 64, %s59, [#allocation4]
    $region21: #{tpu_custom_call.1} parent=1 // pred_fallthru
      _
    // Predicated region
    $region22: #{tpu_custom_call.1} parent=1 // pred_check
      _
    $region23: #{tpu_custom_call.1} parent=1 // pred_check_branch
      %63 = sbr.rel (0) target = $region25
    $region24: #{tpu_custom_call.1} parent=1 // pred_region
      %65 = dma.done [#allocation4], 64
    $region25: #{tpu_custom_call.1} parent=1 // pred_fallthru
      _
    %66 = vsyncpa [#allocation3], 1
    %67 = vsyncpa [#allocation6], 1
    %68 = vsyncpa [#allocation4], 1

</llo_original>
